<compile_context>
chip_gen: v5e
topology: v5e:2x2
jax: 0.10.0
libtpu: 0.0.40
codegen_flags: <defaults>
</compile_context>

<pallas_src>
import functools

import jax
import jax.numpy as jnp
from jax.experimental import pallas as pl
from jax.experimental.pallas import tpu as pltpu

LANES = 128
SUBLANES = 8
TARGET_TILE_ROWS = 4096   # 4096 * 128 * 4 B = 2 MiB / f32 input / pipeline buffer
NUM_SLICES = 2            # leading slice axis -> both TensorCores on v7x

_PARALLEL = getattr(pltpu, "PARALLEL", "parallel")
_ARBITRARY = getattr(pltpu, "ARBITRARY", "arbitrary")


def _round_up(a, b):
    return ((a + b - 1) // b) * b


@functools.lru_cache(maxsize=None)
def _slice_axis_semantics():
    """Semantics for the leading (per-core slice) grid axis.

    On v7x (2 TensorCores) CORE_PARALLEL forces the slice axis to be split
    across both cores so they stream HBM concurrently (~2x bandwidth).  It is
    probed once on a tiny kernel; we fall back to PARALLEL if it is missing,
    rejected by the compiler, or does not reproduce the expected result
    (e.g. single-TensorCore chips).
    """
    core_parallel = getattr(pltpu, "CORE_PARALLEL", None)
    if core_parallel is None:
        return _PARALLEL

    def _probe_kernel(x_ref, o_ref):
        o_ref[...] = x_ref[...] + pl.program_id(0).astype(jnp.float32)

    try:
        out = pl.pallas_call(
            _probe_kernel,
            out_shape=jax.ShapeDtypeStruct((NUM_SLICES, SUBLANES, LANES), jnp.float32),
            grid_spec=pltpu.PrefetchScalarGridSpec(
                num_scalar_prefetch=0,
                grid=(NUM_SLICES,),
                in_specs=[pl.BlockSpec((1, SUBLANES, LANES), lambda c: (c, 0, 0))],
                out_specs=pl.BlockSpec((1, SUBLANES, LANES), lambda c: (c, 0, 0)),
            ),
            compiler_params=pltpu.CompilerParams(
                dimension_semantics=(core_parallel,)),
        )(jnp.zeros((NUM_SLICES, SUBLANES, LANES), jnp.float32))
        expected = jnp.arange(NUM_SLICES, dtype=jnp.float32)[:, None, None]
        if bool(jnp.allclose(out, jnp.broadcast_to(expected, out.shape))):
            return core_parallel
    except Exception:  # pragma: no cover - depends on chip generation / jax version
        pass
    return _PARALLEL


def _dice_partial_kernel(x_ref, t_ref, inter_ref, total_ref, *,
                         rows, tile_rows, tiles_per_slice, n_tiles, needs_mask):
    c = pl.program_id(0)   # slice index (split across cores on v7x)
    i = pl.program_id(1)   # row-tile index within the slice (reduction axis)

    # Initialize this slice's resident accumulator (output) blocks.
    @pl.when(i == 0)
    def _():
        inter_ref[...] = jnp.zeros_like(inter_ref)
        total_ref[...] = jnp.zeros_like(total_ref)

    x = x_ref[...].astype(jnp.float32)
    t = t_ref[...].astype(jnp.float32)

    def _accumulate(xv, tv):
        # Two fused reductions; per-lane accumulation (pure VPU adds per tile).
        prod = (xv * tv).reshape(-1, SUBLANES, LANES)
        both = (xv + tv).reshape(-1, SUBLANES, LANES)
        inter_ref[...] += jnp.sum(prod, axis=0)[None]
        total_ref[...] += jnp.sum(both, axis=0)[None]

    if not needs_mask:
        _accumulate(x, t)
    else:
        tile_idx = c * tiles_per_slice + i
        is_tail = tile_idx == (n_tiles - 1)

        # Interior tiles: mask-free fast path.
        @pl.when(jnp.logical_not(is_tail))
        def _():
            _accumulate(x, t)

        # Only the single partial tail tile pays for the mask.  The mask is
        # applied BEFORE any arithmetic so out-of-bounds rows (garbage) never
        # enter the sums.
        @pl.when(is_tail)
        def _():
            local = jax.lax.broadcasted_iota(jnp.int32, (tile_rows, 1), 0)
            valid = (tile_idx * tile_rows + local) < rows
            _accumulate(jnp.where(valid, x, 0.0), jnp.where(valid, t, 0.0))


def dice_loss(inputs, targets, smooth=1.0):
    """Pallas Dice loss: 1 - (2*sum(x*t)+s)/(sum(x)+sum(t)+s). Returns scalar f32."""
    assert inputs.shape == targets.shape
    x = jnp.ravel(inputs)
    t = jnp.ravel(targets)
    n = x.shape[0]

    n_main = (n // LANES) * LANES        # lane-aligned prefix handled by the kernel
    n_tail = n - n_main                  # < 128 leftover elements (folded in with jnp)

    if n_main == 0:
        # Fewer than 128 elements: plain jnp is the right tool.
        xf = x.astype(jnp.float32)
        tf = t.astype(jnp.float32)
        intersection = jnp.sum(xf * tf)
        total = jnp.sum(xf) + jnp.sum(tf)
    else:
        # Zero-copy reshape when n is lane-aligned; otherwise only the aligned
        # prefix is sliced (no full-array pad copies).
        x_main = x[:n_main] if n_tail else x
        t_main = t[:n_main] if n_tail else t
        rows = n_main // LANES
        x2 = x_main.reshape(rows, LANES)
        t2 = t_main.reshape(rows, LANES)

        tile_rows = min(TARGET_TILE_ROWS, _round_up(rows, SUBLANES))  # multiple of 8
        n_tiles = pl.cdiv(rows, tile_rows)
        # Use the parallel slice axis only when it covers n_tiles exactly, so
        # there are no clamped / duplicate tile reads.
        if n_tiles >= NUM_SLICES and n_tiles % NUM_SLICES == 0:
            num_slices = NUM_SLICES
        else:
            num_slices = 1
        tiles_per_slice = n_tiles // num_slices
        needs_mask = (rows % tile_rows) != 0   # only the last tile is partial

        kernel = functools.partial(
            _dice_partial_kernel,
            rows=rows,
            tile_rows=tile_rows,
            tiles_per_slice=tiles_per_slice,
            n_tiles=n_tiles,
            needs_mask=needs_mask,
        )

        def in_index_map(c, i):
            return (c * tiles_per_slice + i, 0)

        part_shape = jax.ShapeDtypeStruct((num_slices, SUBLANES, LANES), jnp.float32)
        part_spec = pl.BlockSpec((1, SUBLANES, LANES), lambda c, i: (c, 0, 0))

        sem0 = _slice_axis_semantics() if num_slices > 1 else _PARALLEL

        inter_parts, total_parts = pl.pallas_call(
            kernel,
            out_shape=(part_shape, part_shape),
            grid_spec=pltpu.PrefetchScalarGridSpec(
                num_scalar_prefetch=0,
                grid=(num_slices, tiles_per_slice),
                in_specs=[
                    pl.BlockSpec((tile_rows, LANES), in_index_map),
                    pl.BlockSpec((tile_rows, LANES), in_index_map),
                ],
                out_specs=(part_spec, part_spec),
            ),
            compiler_params=pltpu.CompilerParams(
                dimension_semantics=(sem0, _ARBITRARY)),
        )(x2, t2)

        intersection = jnp.sum(inter_parts)
        total = jnp.sum(total_parts)

        if n_tail:
            xt = x[n_main:].astype(jnp.float32)
            tt = t[n_main:].astype(jnp.float32)
            intersection = intersection + jnp.sum(xt * tt)
            total = total + jnp.sum(xt + tt)

    smooth = jnp.float32(smooth)
    return 1.0 - (2.0 * intersection + smooth) / (total + smooth)


def _reference(inputs, targets, smooth=1.0):
    x = jnp.ravel(inputs).astype(jnp.float32)
    t = jnp.ravel(targets).astype(jnp.float32)
    inter = jnp.sum(x * t)
    dice = (2.0 * inter + smooth) / (jnp.sum(x) + jnp.sum(t) + smooth)
    return 1.0 - dice


if __name__ == "__main__":
    key = jax.random.PRNGKey(0)
    k1, k2 = jax.random.split(key)

    # NCHW-like shapes typical for segmentation logits/masks.
    shape = (2, 4, 16, 16)
    inputs = jax.nn.sigmoid(jax.random.normal(k1, shape, dtype=jnp.float32))
    targets = (jax.random.uniform(k2, shape) > 0.5).astype(jnp.float32)

    loss = jax.block_until_ready(dice_loss(inputs, targets, smooth=1.0))
    ref = _reference(inputs, targets, smooth=1.0)
    assert jnp.allclose(loss, ref, rtol=1e-5, atol=1e-5), (loss, ref)

    # Extra coverage:
    #  (a) numel not a multiple of 128 -> jnp tail + in-kernel partial-block mask
    #  (b) larger bf16 input           -> multi-tile accumulation, two parallel
    #                                     slices (CORE_PARALLEL probe), partial
    #                                     tail tile, narrow-dtype input path
    cases = [((3, 5, 7, 11), jnp.float32, 1e-5),
             ((2, 4, 416, 512), jnp.bfloat16, 1e-4)]
    for extra_shape, dtype, tol in cases:
        ka, kb = jax.random.split(jax.random.PRNGKey(1))
        xi = jax.nn.sigmoid(
            jax.random.normal(ka, extra_shape, dtype=jnp.float32)).astype(dtype)
        ti = (jax.random.uniform(kb, extra_shape) > 0.5).astype(dtype)
        l = jax.block_until_ready(dice_loss(xi, ti, smooth=1.0))
        r = _reference(xi, ti, smooth=1.0)
        assert jnp.allclose(l, r, rtol=tol, atol=tol), (extra_shape, l, r)

    print("KERNEL_OK")
</pallas_src>

<mosaic_0001>
module attributes {stable_mosaic.version = 11 : i64} {
  func.func @_dice_partial_kernel(%arg0: i32, %arg1: i32, %arg2: memref<16x128xf32, #tpu.memory_space<vmem>>, %arg3: memref<16x128xf32, #tpu.memory_space<vmem>>, %arg4: memref<1x8x128xf32, #tpu.memory_space<vmem>>, %arg5: memref<1x8x128xf32, #tpu.memory_space<vmem>>) attributes {dimension_semantics = [#tpu.dimension_semantics<parallel>, #tpu.dimension_semantics<arbitrary>], iteration_bounds = array<i64: 1, 1>, scalar_prefetch = 0 : i64, scratch_operands = 0 : i64, tpu.core_type = #tpu.core_type<tc>, window_params = [{transform_indices = @transform_0, window_bounds = array<i64: 16, 128>}, {transform_indices = @transform_1, window_bounds = array<i64: 16, 128>}, {transform_indices = @transform_2, window_bounds = array<i64: 1, 8, 128>}, {transform_indices = @transform_3, window_bounds = array<i64: 1, 8, 128>}]} {
    %c0_i32 = arith.constant 0 : i32
    %0 = arith.cmpi eq, %arg1, %c0_i32 : i32
    %1 = arith.extui %0 : i1 to i32
    %c0_i32_0 = arith.constant 0 : i32
    %2 = arith.cmpi ne, %1, %c0_i32_0 : i32
    scf.if %2 {
      %cst_17 = arith.constant 0.000000e+00 : f32
      %19 = vector.broadcast %cst_17 : f32 to vector<1x8x128xf32>
      %c0_18 = arith.constant 0 : index
      %c0_19 = arith.constant 0 : index
      %c0_20 = arith.constant 0 : index
      %20 = vector.load %arg4[%c0_18, %c0_19, %c0_20] : memref<1x8x128xf32, #tpu.memory_space<vmem>>, vector<1x8x128xf32>
      tpu.vector_store %arg4[%c0_18, %c0_19, %c0_20], %19 {strides = array<i32>} : memref<1x8x128xf32, #tpu.memory_space<vmem>>, vector<1x8x128xf32>,
      %cst_21 = arith.constant 0.000000e+00 : f32
      %21 = vector.broadcast %cst_21 : f32 to vector<1x8x128xf32>
      %c0_22 = arith.constant 0 : index
      %c0_23 = arith.constant 0 : index
      %c0_24 = arith.constant 0 : index
      %22 = vector.load %arg5[%c0_22, %c0_23, %c0_24] : memref<1x8x128xf32, #tpu.memory_space<vmem>>, vector<1x8x128xf32>
      tpu.vector_store %arg5[%c0_22, %c0_23, %c0_24], %21 {strides = array<i32>} : memref<1x8x128xf32, #tpu.memory_space<vmem>>, vector<1x8x128xf32>,
    } else {
    }
    %c0 = arith.constant 0 : index
    %c0_1 = arith.constant 0 : index
    %3 = vector.load %arg2[%c0, %c0_1] : memref<16x128xf32, #tpu.memory_space<vmem>>, vector<16x128xf32>
    %c0_2 = arith.constant 0 : index
    %c0_3 = arith.constant 0 : index
    %4 = vector.load %arg3[%c0_2, %c0_3] : memref<16x128xf32, #tpu.memory_space<vmem>>, vector<16x128xf32>
    %5 = arith.mulf %3, %4 : vector<16x128xf32>
    %6 = vector.shape_cast %5 : vector<16x128xf32> to vector<2x8x128xf32>
    %7 = arith.addf %3, %4 : vector<16x128xf32>
    %8 = vector.shape_cast %7 : vector<16x128xf32> to vector<2x8x128xf32>
    %c0_4 = arith.constant 0 : index
    %c0_5 = arith.constant 0 : index
    %c0_6 = arith.constant 0 : index
    %9 = vector.load %arg4[%c0_4, %c0_5, %c0_6] : memref<1x8x128xf32, #tpu.memory_space<vmem>>, vector<1x8x128xf32>
    %cst = arith.constant dense<0.000000e+00> : vector<8x128xf32>
    %10 = vector.multi_reduction <add>, %6, %cst [0] : vector<2x8x128xf32> to vector<8x128xf32>
    %11 = vector.shape_cast %10 : vector<8x128xf32> to vector<1x8x128xf32>
    %12 = arith.addf %9, %11 : vector<1x8x128xf32>
    %c0_7 = arith.constant 0 : index
    %c0_8 = arith.constant 0 : index
    %c0_9 = arith.constant 0 : index
    %13 = vector.load %arg4[%c0_7, %c0_8, %c0_9] : memref<1x8x128xf32, #tpu.memory_space<vmem>>, vector<1x8x128xf32>
    tpu.vector_store %arg4[%c0_7, %c0_8, %c0_9], %12 {strides = array<i32>} : memref<1x8x128xf32, #tpu.memory_space<vmem>>, vector<1x8x128xf32>,
    %c0_10 = arith.constant 0 : index
    %c0_11 = arith.constant 0 : index
    %c0_12 = arith.constant 0 : index
    %14 = vector.load %arg5[%c0_10, %c0_11, %c0_12] : memref<1x8x128xf32, #tpu.memory_space<vmem>>, vector<1x8x128xf32>
    %cst_13 = arith.constant dense<0.000000e+00> : vector<8x128xf32>
    %15 = vector.multi_reduction <add>, %8, %cst_13 [0] : vector<2x8x128xf32> to vector<8x128xf32>
    %16 = vector.shape_cast %15 : vector<8x128xf32> to vector<1x8x128xf32>
    %17 = arith.addf %14, %16 : vector<1x8x128xf32>
    %c0_14 = arith.constant 0 : index
    %c0_15 = arith.constant 0 : index
    %c0_16 = arith.constant 0 : index
    %18 = vector.load %arg5[%c0_14, %c0_15, %c0_16] : memref<1x8x128xf32, #tpu.memory_space<vmem>>, vector<1x8x128xf32>
    tpu.vector_store %arg5[%c0_14, %c0_15, %c0_16], %17 {strides = array<i32>} : memref<1x8x128xf32, #tpu.memory_space<vmem>>, vector<1x8x128xf32>,
    return
  }
  func.func @transform_0(%arg0: i32, %arg1: i32) -> (i32, i32) {
    %c1_i32 = arith.constant 1 : i32
    %0 = arith.muli %arg0, %c1_i32 : i32
    %1 = arith.addi %0, %arg1 : i32
    %c0_i32 = arith.constant 0 : i32
    %c0_i32_0 = arith.constant 0 : i32
    return %1, %c0_i32 : i32, i32
  }
  func.func @transform_1(%arg0: i32, %arg1: i32) -> (i32, i32) {
    %c1_i32 = arith.constant 1 : i32
    %0 = arith.muli %arg0, %c1_i32 : i32
    %1 = arith.addi %0, %arg1 : i32
    %c0_i32 = arith.constant 0 : i32
    %c0_i32_0 = arith.constant 0 : i32
    return %1, %c0_i32 : i32, i32
  }
  func.func @transform_2(%arg0: i32, %arg1: i32) -> (i32, i32, i32) {
    %c0_i32 = arith.constant 0 : i32
    %c0_i32_0 = arith.constant 0 : i32
    %c0_i32_1 = arith.constant 0 : i32
    return %arg0, %c0_i32, %c0_i32_0 : i32, i32, i32
  }
  func.func @transform_3(%arg0: i32, %arg1: i32) -> (i32, i32, i32) {
    %c0_i32 = arith.constant 0 : i32
    %c0_i32_0 = arith.constant 0 : i32
    %c0_i32_1 = arith.constant 0 : i32
    return %arg0, %c0_i32, %c0_i32_0 : i32, i32, i32
  }
}

</mosaic_0001>

<llo_original>
// kernel: tpu_custom_call.1
$region0: #{tpu_custom_call.1}
  #allocation0 [shape = 'u32[]', space=smem, size = 0x4, offset = 0x4, fixed_abs, tag = 'smem constant byte address 0x4 - core index']
  #allocation1 [shape = 'u32[72,128]{1,0:T(1,128)}', space=vmem, size = 0x9000, scoped, tag = 'internal scratch']
  %s0 = inlined_call_operand.hbm [shape: f32[16,128], index: 0, kind: input, shape index: {}]
  %s1 = inlined_call_operand.hbm [shape: f32[16,128], index: 1, kind: input, shape index: {}]
  %s2 = inlined_call_operand.hbm [shape: f32[1,8,128], index: 2, kind: output, shape index: {0}]
  %s3 = inlined_call_operand.hbm [shape: f32[1,8,128], index: 3, kind: output, shape index: {1}]
  %4 = xla_tuple %s2, %s3
  %s5 = sld [smem:[#allocation0]]
  $region38: #{tpu_custom_call.1} parent=0
    _
  %s7 = ssub.s32 1, %s5
  %s8 = scalar_select 0, %s7, %s5
  $region1: #{tpu_custom_call.1} parent=0
    #allocation2 [shape = 'u8[8192]{0}', space=vmem, size = 0x2000, scoped, tag = 'input window, operand 0, single buffered']
    #allocation3 [shape = 's32[1]{0}', space=sflag, size = 0x4, scoped, tag = 'scoped memory for tpu_custom_call.1']
    #allocation4 [shape = 's32[1]{0}', space=sflag, size = 0x4, scoped, tag = 'scoped memory for tpu_custom_call.1']
    #allocation5 [shape = 'u8[8192]{0}', space=vmem, size = 0x2000, scoped, tag = 'input window, operand 1, single buffered']
    #allocation6 [shape = 's32[1]{0}', space=sflag, size = 0x4, scoped, tag = 'scoped memory for tpu_custom_call.1']
    #allocation7 [shape = 'u8[4096]{0}', space=vmem, size = 0x1000, scoped, tag = 'output window, operand 0, single buffered']
    #allocation8 [shape = 'u8[4096]{0}', space=vmem, size = 0x1000, scoped, tag = 'output window, operand 1, single buffered']
    #allocation9 [shape = 's32[1]{0}', space=sflag, size = 0x4, scoped, tag = 'scoped memory for tpu_custom_call.1']
    %9 = vsyncpa [#allocation3], 0
    %10 = vsyncpa [#allocation6], 0
    %11 = vsyncpa [#allocation4], 0
    %12 = vsyncpa [#allocation9], 0
    // Predicated region
    $region2: #{tpu_custom_call.1} parent=1 // pred_check
      _
    $region3: #{tpu_custom_call.1} parent=1 // pred_check_branch
      %14 = sbr.rel (0) target = $region5
    $region4: #{tpu_custom_call.1} parent=1 // pred_region
      %s15 = sadd.s32 0, 0
      %s16 = smul.u32 2, %s15
      %18 = vsyncadd [#allocation3], 0
      %s19 = smul.addr %s16, 8
      %s20 = scalar_lea.hbm %s0, %s19
      %s21 = sshll.u32 %s20, 4
      %s22 = int_to_ptr.hbm [resolvable:$true] %s21
      %s23 = sshll.u32 [#allocation2], 4
      %s24 = int_to_ptr.vmem [resolvable:$true] %s23
      %29 = dma.hbm_to_vmem [thread:$0]  %s22, 256, %s24, [#allocation3], 128, 128, 8
    $region5: #{tpu_custom_call.1} parent=1 // pred_fallthru
      _
    // Predicated region
    $region6: #{tpu_custom_call.1} parent=1 // pred_check
      _
    $region7: #{tpu_custom_call.1} parent=1 // pred_check_branch
      %31 = sbr.rel (0) target = $region9
    $region8: #{tpu_custom_call.1} parent=1 // pred_region
      %s32 = sadd.s32 0, 0
      %s33 = smul.u32 2, %s32
      %35 = vsyncadd [#allocation6], 0
      %s36 = smul.addr %s33, 8
      %s37 = scalar_lea.hbm %s1, %s36
      %s38 = sshll.u32 %s37, 4
      %s39 = int_to_ptr.hbm [resolvable:$true] %s38
      %s40 = sshll.u32 [#allocation5], 4
      %s41 = int_to_ptr.vmem [resolvable:$true] %s40
      %46 = dma.hbm_to_vmem [thread:$0]  %s39, 256, %s41, [#allocation6], 128, 128, 8
    $region9: #{tpu_custom_call.1} parent=1 // pred_fallthru
      _
    // Predicated region
    $region10: #{tpu_custom_call.1} parent=1 // pred_check
      _
    $region11: #{tpu_custom_call.1} parent=1 // pred_check_branch
      %48 = sbr.rel (0) target = $region13
    $region12: #{tpu_custom_call.1} parent=1 // pred_region
      %50 = dma.done [#allocation3], 256
    $region13: #{tpu_custom_call.1} parent=1 // pred_fallthru
      _
    // Predicated region
    $region14: #{tpu_custom_call.1} parent=1 // pred_check
      _
    $region15: #{tpu_custom_call.1} parent=1 // pred_check_branch
      %52 = sbr.rel (0) target = $region17
    $region16: #{tpu_custom_call.1} parent=1 // pred_region
      %54 = dma.done [#allocation6], 256
    $region17: #{tpu_custom_call.1} parent=1 // pred_fallthru
      _
    %s55 = sadd.s32 0, 0
    %s56 = smul.u32 2, %s55
    %s57 = sadd.s32 0, 0
    %s58 = smul.u32 2, %s57
    %p59 = scmp.eq.s32.totalorder 0, 0
    // Predicated region
    $region18: #{tpu_custom_call.1} parent=1 // pred_check
      %p60 = pneg %p59
    $region19: #{tpu_custom_call.1} parent=1 // pred_check_branch
      %62 = sbr.rel (%p60) target = $region21
    $region20: #{tpu_custom_call.1} parent=1 // pred_region
      %63 = vst [vmem:[#allocation7] sm:$0xff] 0.0
      %64 = vst [vmem:[#allocation8] sm:$0xff] 0.0
    $region21: #{tpu_custom_call.1} parent=1 // pred_fallthru
      _
    %v65 = vld [vmem:[#allocation2] sm:$0xff]
    %v66 = vld [vmem:[#allocation2 + $0x8] sm:$0xff]
    %v67 = vld [vmem:[#allocation5] sm:$0xff]
    %v68 = vld [vmem:[#allocation5 + $0x8] sm:$0xff]
    %v69 = vmul.f32 %v65, %v67
    %v70 = vmul.f32 %v66, %v68
    %v71 = vadd.f32 %v65, %v67
    %v72 = vadd.f32 %v66, %v68
    %v73 = vld [vmem:[#allocation7] sm:$0xff]
    %v74 = vadd.f32 %v69, %v70
    %v75 = vadd.f32 %v73, %v74
    %76 = vst [vmem:[#allocation7] sm:$0xff] %v75
    %v77 = vld [vmem:[#allocation8] sm:$0xff]
    %v78 = vadd.f32 %v71, %v72
    %v79 = vadd.f32 %v77, %v78
    %80 = vst [vmem:[#allocation8] sm:$0xff] %v79
    // Predicated region
    $region22: #{tpu_custom_call.1} parent=1 // pred_check
      _
    $region23: #{tpu_custom_call.1} parent=1 // pred_check_branch
      %82 = sbr.rel (0) target = $region25
    $region24: #{tpu_custom_call.1} parent=1 // pred_region
      %84 = vsyncadd [#allocation4], 0
      %s86 = sshll.u32 [#allocation7], 4
      %s87 = int_to_ptr.vmem [resolvable:$true] %s86
      %s88 = sshll.u32 %s2, 4
      %s89 = int_to_ptr.hbm [resolvable:$true] %s88
      %91 = dma.vmem_to_hbm [thread:$0]  %s87, 128, %s89, [#allocation4]
    $region25: #{tpu_custom_call.1} parent=1 // pred_fallthru
      _
    // Predicated region
    $region26: #{tpu_custom_call.1} parent=1 // pred_check
      _
    $region27: #{tpu_custom_call.1} parent=1 // pred_check_branch
      %93 = sbr.rel (0) target = $region29
    $region28: #{tpu_custom_call.1} parent=1 // pred_region
      %95 = vsyncadd [#allocation9], 0
      %s97 = sshll.u32 [#allocation8], 4
      %s98 = int_to_ptr.vmem [resolvable:$true] %s97
      %s99 = sshll.u32 %s3, 4
      %s100 = int_to_ptr.hbm [resolvable:$true] %s99
      %102 = dma.vmem_to_hbm [thread:$0]  %s98, 128, %s100, [#allocation9]
    $region29: #{tpu_custom_call.1} parent=1 // pred_fallthru
      _
    // Predicated region
    $region30: #{tpu_custom_call.1} parent=1 // pred_check
      _
    $region31: #{tpu_custom_call.1} parent=1 // pred_check_branch
      %104 = sbr.rel (0) target = $region33
    $region32: #{tpu_custom_call.1} parent=1 // pred_region
      %106 = dma.done [#allocation4], 128
    $region33: #{tpu_custom_call.1} parent=1 // pred_fallthru
      _
    // Predicated region
    $region34: #{tpu_custom_call.1} parent=1 // pred_check
      _
    $region35: #{tpu_custom_call.1} parent=1 // pred_check_branch
      %108 = sbr.rel (0) target = $region37
    $region36: #{tpu_custom_call.1} parent=1 // pred_region
      %110 = dma.done [#allocation9], 128
    $region37: #{tpu_custom_call.1} parent=1 // pred_fallthru
      _
    %111 = vsyncpa [#allocation3], 1
    %112 = vsyncpa [#allocation6], 1
    %113 = vsyncpa [#allocation4], 1
    %114 = vsyncpa [#allocation9], 1

</llo_original>
